<compile_context>
chip_gen: v6e
topology: v6e:2x2x1
jax: 0.10.0
libtpu: 0.0.40
codegen_flags: <defaults>
</compile_context>

<pallas_src>
import functools
import math

import jax
import jax.numpy as jnp
from jax.experimental import pallas as pl
from jax.experimental.pallas import tpu as pltpu


def _softmax_kernel(x_ref, o_ref, *, axis):
    """Numerically-stable softmax along `axis` of the VMEM tile (f32 compute)."""
    x = x_ref[...].astype(jnp.float32)
    m = jnp.max(x, axis=axis, keepdims=True)
    e = jnp.exp(x - m)
    s = jnp.sum(e, axis=axis, keepdims=True)
    # EUP approximate reciprocal + one Newton refinement -> ~f32 accuracy.
    r = pl.reciprocal(s, approx=True)
    r = r * (2.0 - s * r)
    o_ref[...] = (e * r).astype(o_ref.dtype)


def _vmem_capacity_bytes():
    try:
        return int(pltpu.get_tpu_info().vmem_capacity_bytes)
    except Exception:
        return 64 * 1024 * 1024  # conservative: v7x per-TensorCore VMEM


def _budgets():
    cap = _vmem_capacity_bytes()
    # f32 footprint per block; leaves room for double-buffered in+out + temps.
    block_bytes = max(64 * 1024, cap // 16)          # 4 MiB on v7x, 8 MiB on v5e/v6e
    vmem_limit = min(cap // 2, 64 * 1024 * 1024)     # scoped VMEM limit
    return block_bytes, vmem_limit


def _softmax_rows(x2d, *, block_bytes, vmem_limit):
    """Softmax over the last axis of a (rows, C) slab (trailing-axis case)."""
    rows, c = x2d.shape
    if rows <= 8:
        tm = rows                                    # block == full extent: allowed
    else:
        tm = max(8, block_bytes // (c * 4))
        tm = min(tm, rows)
        tm = (tm // 8) * 8
    grid = (pl.cdiv(rows, tm),)
    return pl.pallas_call(
        functools.partial(_softmax_kernel, axis=-1),
        out_shape=jax.ShapeDtypeStruct((rows, c), x2d.dtype),
        grid_spec=pltpu.PrefetchScalarGridSpec(
            num_scalar_prefetch=0,
            grid=grid,
            in_specs=[pl.BlockSpec((tm, c), lambda i: (i, 0))],
            out_specs=pl.BlockSpec((tm, c), lambda i: (i, 0)),
        ),
        compiler_params=pltpu.CompilerParams(
            dimension_semantics=("parallel",),
            vmem_limit_bytes=vmem_limit,
        ),
    )(x2d)


def _softmax_mid(x3, *, block_bytes, vmem_limit):
    """Softmax over axis 1 of a (P, C, Q) slab; C on sublanes, Q on lanes."""
    p, c, q = x3.shape
    # Lane tile: full Q if small, else a multiple of 128 (lane-dense stores).
    if q <= 128:
        tn = q
    else:
        tn = max(128, block_bytes // (c * 4))
        tn = min(tn, q)
        tn = (tn // 128) * 128
    # Spend leftover budget on more leading rows per grid step.
    bp = max(1, block_bytes // (c * tn * 4))
    bp = min(bp, p)
    grid = (pl.cdiv(p, bp), pl.cdiv(q, tn))
    return pl.pallas_call(
        functools.partial(_softmax_kernel, axis=1),
        out_shape=jax.ShapeDtypeStruct((p, c, q), x3.dtype),
        grid_spec=pltpu.PrefetchScalarGridSpec(
            num_scalar_prefetch=0,
            grid=grid,
            in_specs=[pl.BlockSpec((bp, c, tn), lambda i, j: (i, 0, j))],
            out_specs=pl.BlockSpec((bp, c, tn), lambda i, j: (i, 0, j)),
        ),
        compiler_params=pltpu.CompilerParams(
            dimension_semantics=("parallel", "parallel"),
            vmem_limit_bytes=vmem_limit,
        ),
    )(x3)


@functools.partial(jax.jit, static_argnames=("dim",))
def softmax_reversible_forward(x, dim=-1):
    """Pallas implementation of SoftMaxReversible.forward (softmax over `dim`)."""
    ndim = x.ndim
    axis = dim % ndim
    shape = x.shape
    c = shape[axis]
    pre = math.prod(shape[:axis])
    post = math.prod(shape[axis + 1:])

    block_bytes, vmem_limit = _budgets()

    if post == 1:
        # Trailing softmax axis: one pass over HBM in the natural layout.
        # Blocks (tm, c) are contiguous rows, so DMAs are dense for any c.
        x2d = x.reshape(pre, c)
        out = _softmax_rows(x2d, block_bytes=block_bytes, vmem_limit=vmem_limit)
        return out.reshape(shape)

    # Softmax over a non-trailing axis: reduce over the sublane axis of the
    # original (pre, C, post) layout -- avoids a moveaxis HBM round-trip and
    # keeps the lane axis dense on `post`.
    min_block = c * min(post, 128) * 4
    if min_block <= block_bytes:
        x3 = x.reshape(pre, c, post)
        out3 = _softmax_mid(
            x3, block_bytes=max(block_bytes, min_block), vmem_limit=vmem_limit
        )
        return out3.reshape(shape)

    # Fallback for huge softmax axes that don't fit one block: move axis last.
    x_moved = jnp.moveaxis(x, axis, -1)
    out = _softmax_rows(
        x_moved.reshape(-1, c), block_bytes=block_bytes, vmem_limit=vmem_limit
    ).reshape(x_moved.shape)
    return jnp.moveaxis(out, -1, axis)


if __name__ == "__main__":
    key = jax.random.PRNGKey(0)

    # SoftMaxReversible has no learnable parameters (only the `dim` attribute).
    # 1) NCHW-style input, softmax over the (small) trailing width.
    x = jax.random.normal(key, (2, 4, 16, 16), dtype=jnp.float32)
    y = softmax_reversible_forward(x, dim=-1)
    jax.block_until_ready(y)
    y_ref = jax.nn.softmax(x, axis=-1)
    assert y.shape == x.shape and y.dtype == x.dtype
    assert jnp.allclose(y, y_ref, atol=1e-5, rtol=1e-5)
    assert jnp.allclose(jnp.sum(y, axis=-1), 1.0, atol=1e-4)

    # 2) Same input, softmax over the channel axis (non-trailing / sublane-reduce path).
    y1 = softmax_reversible_forward(x, dim=1)
    jax.block_until_ready(y1)
    y1_ref = jax.nn.softmax(x, axis=1)
    assert y1.shape == x.shape and y1.dtype == x.dtype
    assert jnp.allclose(y1, y1_ref, atol=1e-5, rtol=1e-5)
    assert jnp.allclose(jnp.sum(y1, axis=1), 1.0, atol=1e-4)

    # 3) Wide trailing dim (lane-reduce, row-tiled path).
    x2 = jax.random.normal(jax.random.PRNGKey(1), (4, 8, 256), dtype=jnp.float32)
    y2 = softmax_reversible_forward(x2, dim=-1)
    jax.block_until_ready(y2)
    y2_ref = jax.nn.softmax(x2, axis=-1)
    assert y2.shape == x2.shape and y2.dtype == x2.dtype
    assert jnp.allclose(y2, y2_ref, atol=1e-5, rtol=1e-5)

    print("KERNEL_OK")
</pallas_src>

<mosaic_0001>
module attributes {stable_mosaic.version = 11 : i64} {
  func.func @_softmax_kernel(%arg0: i32, %arg1: memref<128x16xf32, #tpu.memory_space<vmem>>, %arg2: memref<128x16xf32, #tpu.memory_space<vmem>>) attributes {dimension_semantics = [#tpu.dimension_semantics<parallel>], iteration_bounds = array<i64: 1>, scalar_prefetch = 0 : i64, scratch_operands = 0 : i64, tpu.core_type = #tpu.core_type<tc>, window_params = [{transform_indices = @transform_0, window_bounds = array<i64: 128, 16>}, {transform_indices = @transform_1, window_bounds = array<i64: 128, 16>}]} {
    %c0 = arith.constant 0 : index
    %c0_0 = arith.constant 0 : index
    %0 = vector.load %arg1[%c0, %c0_0] : memref<128x16xf32, #tpu.memory_space<vmem>>, vector<128x16xf32>
    %cst = arith.constant dense<0xFF800000> : vector<128xf32>
    %1 = vector.multi_reduction <maximumf>, %0, %cst [1] : vector<128x16xf32> to vector<128xf32>
    %2 = vector.shape_cast %1 : vector<128xf32> to vector<128x1xf32>
    %3 = vector.broadcast %2 : vector<128x1xf32> to vector<128x16xf32>
    %4 = arith.subf %0, %3 : vector<128x16xf32>
    %5 = math.exp %4 : vector<128x16xf32>
    %cst_1 = arith.constant dense<0.000000e+00> : vector<128xf32>
    %6 = vector.multi_reduction <add>, %5, %cst_1 [1] : vector<128x16xf32> to vector<128xf32>
    %7 = vector.shape_cast %6 : vector<128xf32> to vector<128x1xf32>
    %8 = tpu.reciprocal %7 {approx = true} : vector<128x1xf32> -> vector<128x1xf32>
    %9 = arith.mulf %7, %8 : vector<128x1xf32>
    %cst_2 = arith.constant 2.000000e+00 : f32
    %10 = vector.broadcast %cst_2 : f32 to vector<128x1xf32>
    %11 = arith.subf %10, %9 : vector<128x1xf32>
    %12 = arith.mulf %8, %11 : vector<128x1xf32>
    %13 = vector.broadcast %12 : vector<128x1xf32> to vector<128x16xf32>
    %14 = arith.mulf %5, %13 : vector<128x16xf32>
    %c0_3 = arith.constant 0 : index
    %c0_4 = arith.constant 0 : index
    %15 = vector.load %arg2[%c0_3, %c0_4] : memref<128x16xf32, #tpu.memory_space<vmem>>, vector<128x16xf32>
    tpu.vector_store %arg2[%c0_3, %c0_4], %14 {strides = array<i32>} : memref<128x16xf32, #tpu.memory_space<vmem>>, vector<128x16xf32>,
    return
  }
  func.func @transform_0(%arg0: i32) -> (i32, i32) {
    %c0_i32 = arith.constant 0 : i32
    %c0_i32_0 = arith.constant 0 : i32
    return %arg0, %c0_i32 : i32, i32
  }
  func.func @transform_1(%arg0: i32) -> (i32, i32) {
    %c0_i32 = arith.constant 0 : i32
    %c0_i32_0 = arith.constant 0 : i32
    return %arg0, %c0_i32 : i32, i32
  }
}

</mosaic_0001>

<llo_original>
// kernel: softmax_reversible_forward.1
$region0: #{softmax_reversible_forward.1}
  #allocation0 [shape = 'u32[]', space=smem, size = 0x4, offset = 0x4, fixed_abs, tag = 'smem constant byte address 0x4 - core index']
  #allocation1 [shape = 'u32[144,128]{1,0:T(1,128)}', space=vmem, size = 0x12000, scoped, tag = 'internal scratch']
  %s0 = inlined_call_operand.hbm [shape: f32[128,16], index: 0, kind: input, shape index: {}]
  %s1 = inlined_call_operand.hbm [shape: f32[128,16], index: 1, kind: output, shape index: {}]
  %s2 = sld [smem:[#allocation0]]
  $region18: #{softmax_reversible_forward.1} parent=0
    _
  %s4 = ssub.s32 1, %s2
  %s5 = scalar_select 0, %s4, %s2
  $region1: #{softmax_reversible_forward.1} parent=0
    #allocation2 [shape = 'u8[65536]{0}', space=vmem, size = 0x10000, scoped, tag = 'input window, operand 0, single buffered']
    #allocation3 [shape = 's32[1]{0}', space=sflag, size = 0x4, scoped, tag = 'scoped memory for softmax_reversible_forward.1']
    #allocation4 [shape = 's32[1]{0}', space=sflag, size = 0x4, scoped, tag = 'scoped memory for softmax_reversible_forward.1']
    #allocation5 [shape = 'u8[65536]{0}', space=vmem, size = 0x10000, scoped, tag = 'output window, operand 0, single buffered']
    %6 = vsyncpa [#allocation3], 0
    %7 = vsyncpa [#allocation4], 0
    // Predicated region
    $region2: #{softmax_reversible_forward.1} parent=1 // pred_check
      _
    $region3: #{softmax_reversible_forward.1} parent=1 // pred_check_branch
      %9 = sbr.rel (0) target = $region5
    $region4: #{softmax_reversible_forward.1} parent=1 // pred_region
      %s11 = ssub.s32 2048, 2048
      %12 = vsyncadd [#allocation3], %s11
      %s13 = sshll.u32 [#allocation2], 4
      %s14 = int_to_ptr.vmem [resolvable:$true] %s13
      %19 = dma.hbm_to_vmem [thread:$0]  %s0, 2048, %s14, [#allocation3], 128, 128, 8
    $region5: #{softmax_reversible_forward.1} parent=1 // pred_fallthru
      _
    // Predicated region
    $region6: #{softmax_reversible_forward.1} parent=1 // pred_check
      _
    $region7: #{softmax_reversible_forward.1} parent=1 // pred_check_branch
      %21 = sbr.rel (0) target = $region9
    $region8: #{softmax_reversible_forward.1} parent=1 // pred_region
      %22 = dma.done [#allocation3], 2048
    $region9: #{softmax_reversible_forward.1} parent=1 // pred_fallthru
      _
    %v23 = vld [vmem:[#allocation2] sm:$0xff]
    %v24 = vld [vmem:[#allocation2 + $0x8] sm:$0xff]
    %v25 = vld [vmem:[#allocation2 + $0x10] sm:$0xff]
    %v26 = vld [vmem:[#allocation2 + $0x18] sm:$0xff]
    %v27 = vld [vmem:[#allocation2 + $0x20] sm:$0xff]
    %v28 = vld [vmem:[#allocation2 + $0x28] sm:$0xff]
    %v29 = vld [vmem:[#allocation2 + $0x30] sm:$0xff]
    %v30 = vld [vmem:[#allocation2 + $0x38] sm:$0xff]
    %v31 = vld [vmem:[#allocation2 + $0x40] sm:$0xff]
    %v32 = vld [vmem:[#allocation2 + $0x48] sm:$0xff]
    %v33 = vld [vmem:[#allocation2 + $0x50] sm:$0xff]
    %v34 = vld [vmem:[#allocation2 + $0x58] sm:$0xff]
    %v35 = vld [vmem:[#allocation2 + $0x60] sm:$0xff]
    %v36 = vld [vmem:[#allocation2 + $0x68] sm:$0xff]
    %v37 = vld [vmem:[#allocation2 + $0x70] sm:$0xff]
    %v38 = vld [vmem:[#allocation2 + $0x78] sm:$0xff]
    %vm39 = vcmask 130048
    %v40 = vsel %vm39, %v23, -inf
    %41 = vmax.xlane.f32.xlu0 %v40
    %v42 = vpop.xlane.xlu0 %41
    %v43 = vsel %vm39, %v24, -inf
    %44 = vmax.xlane.f32.xlu0 %v43
    %v45 = vpop.xlane.xlu0 %44
    %v46 = vsel %vm39, %v25, -inf
    %47 = vmax.xlane.f32.xlu0 %v46
    %v48 = vpop.xlane.xlu0 %47
    %v49 = vsel %vm39, %v26, -inf
    %50 = vmax.xlane.f32.xlu0 %v49
    %v51 = vpop.xlane.xlu0 %50
    %v52 = vsel %vm39, %v27, -inf
    %53 = vmax.xlane.f32.xlu0 %v52
    %v54 = vpop.xlane.xlu0 %53
    %v55 = vsel %vm39, %v28, -inf
    %56 = vmax.xlane.f32.xlu0 %v55
    %v57 = vpop.xlane.xlu0 %56
    %v58 = vsel %vm39, %v29, -inf
    %59 = vmax.xlane.f32.xlu0 %v58
    %v60 = vpop.xlane.xlu0 %59
    %v61 = vsel %vm39, %v30, -inf
    %62 = vmax.xlane.f32.xlu0 %v61
    %v63 = vpop.xlane.xlu0 %62
    %v64 = vsel %vm39, %v31, -inf
    %65 = vmax.xlane.f32.xlu0 %v64
    %v66 = vpop.xlane.xlu0 %65
    %v67 = vsel %vm39, %v32, -inf
    %68 = vmax.xlane.f32.xlu0 %v67
    %v69 = vpop.xlane.xlu0 %68
    %v70 = vsel %vm39, %v33, -inf
    %71 = vmax.xlane.f32.xlu0 %v70
    %v72 = vpop.xlane.xlu0 %71
    %v73 = vsel %vm39, %v34, -inf
    %74 = vmax.xlane.f32.xlu0 %v73
    %v75 = vpop.xlane.xlu0 %74
    %v76 = vsel %vm39, %v35, -inf
    %77 = vmax.xlane.f32.xlu0 %v76
    %v78 = vpop.xlane.xlu0 %77
    %v79 = vsel %vm39, %v36, -inf
    %80 = vmax.xlane.f32.xlu0 %v79
    %v81 = vpop.xlane.xlu0 %80
    %v82 = vsel %vm39, %v37, -inf
    %83 = vmax.xlane.f32.xlu0 %v82
    %v84 = vpop.xlane.xlu0 %83
    %v85 = vsel %vm39, %v38, -inf
    %86 = vmax.xlane.f32.xlu0 %v85
    %v87 = vpop.xlane.xlu0 %86
    %v88 = vsub.f32 %v23, %v42
    %v89 = vsub.f32 %v24, %v45
    %v90 = vsub.f32 %v25, %v48
    %v91 = vsub.f32 %v26, %v51
    %v92 = vsub.f32 %v27, %v54
    %v93 = vsub.f32 %v28, %v57
    %v94 = vsub.f32 %v29, %v60
    %v95 = vsub.f32 %v30, %v63
    %v96 = vsub.f32 %v31, %v66
    %v97 = vsub.f32 %v32, %v69
    %v98 = vsub.f32 %v33, %v72
    %v99 = vsub.f32 %v34, %v75
    %v100 = vsub.f32 %v35, %v78
    %v101 = vsub.f32 %v36, %v81
    %v102 = vsub.f32 %v37, %v84
    %v103 = vsub.f32 %v38, %v87
    %v104 = vmul.f32 %v88, 1.442695
    %v105 = vpow.pop %v104
    %v106 = vmul.f32 %v89, 1.442695
    %v107 = vpow.pop %v106
    %v108 = vmul.f32 %v90, 1.442695
    %v109 = vpow.pop %v108
    %v110 = vmul.f32 %v91, 1.442695
    %v111 = vpow.pop %v110
    %v112 = vmul.f32 %v92, 1.442695
    %v113 = vpow.pop %v112
    %v114 = vmul.f32 %v93, 1.442695
    %v115 = vpow.pop %v114
    %v116 = vmul.f32 %v94, 1.442695
    %v117 = vpow.pop %v116
    %v118 = vmul.f32 %v95, 1.442695
    %v119 = vpow.pop %v118
    %v120 = vmul.f32 %v96, 1.442695
    %v121 = vpow.pop %v120
    %v122 = vmul.f32 %v97, 1.442695
    %v123 = vpow.pop %v122
    %v124 = vmul.f32 %v98, 1.442695
    %v125 = vpow.pop %v124
    %v126 = vmul.f32 %v99, 1.442695
    %v127 = vpow.pop %v126
    %v128 = vmul.f32 %v100, 1.442695
    %v129 = vpow.pop %v128
    %v130 = vmul.f32 %v101, 1.442695
    %v131 = vpow.pop %v130
    %v132 = vmul.f32 %v102, 1.442695
    %v133 = vpow.pop %v132
    %v134 = vmul.f32 %v103, 1.442695
    %v135 = vpow.pop %v134
    %v136 = vsel %vm39, %v105, 0.0
    %137 = vadd.xlane.f32.xlu0 %v136
    %v138 = vpop.xlane.xlu0 %137
    %v139 = vsel %vm39, %v107, 0.0
    %140 = vadd.xlane.f32.xlu0 %v139
    %v141 = vpop.xlane.xlu0 %140
    %v142 = vsel %vm39, %v109, 0.0
    %143 = vadd.xlane.f32.xlu0 %v142
    %v144 = vpop.xlane.xlu0 %143
    %v145 = vsel %vm39, %v111, 0.0
    %146 = vadd.xlane.f32.xlu0 %v145
    %v147 = vpop.xlane.xlu0 %146
    %v148 = vsel %vm39, %v113, 0.0
    %149 = vadd.xlane.f32.xlu0 %v148
    %v150 = vpop.xlane.xlu0 %149
    %v151 = vsel %vm39, %v115, 0.0
    %152 = vadd.xlane.f32.xlu0 %v151
    %v153 = vpop.xlane.xlu0 %152
    %v154 = vsel %vm39, %v117, 0.0
    %155 = vadd.xlane.f32.xlu0 %v154
    %v156 = vpop.xlane.xlu0 %155
    %v157 = vsel %vm39, %v119, 0.0
    %158 = vadd.xlane.f32.xlu0 %v157
    %v159 = vpop.xlane.xlu0 %158
    %v160 = vsel %vm39, %v121, 0.0
    %161 = vadd.xlane.f32.xlu0 %v160
    %v162 = vpop.xlane.xlu0 %161
    %v163 = vsel %vm39, %v123, 0.0
    %164 = vadd.xlane.f32.xlu0 %v163
    %v165 = vpop.xlane.xlu0 %164
    %v166 = vsel %vm39, %v125, 0.0
    %167 = vadd.xlane.f32.xlu0 %v166
    %v168 = vpop.xlane.xlu0 %167
    %v169 = vsel %vm39, %v127, 0.0
    %170 = vadd.xlane.f32.xlu0 %v169
    %v171 = vpop.xlane.xlu0 %170
    %v172 = vsel %vm39, %v129, 0.0
    %173 = vadd.xlane.f32.xlu0 %v172
    %v174 = vpop.xlane.xlu0 %173
    %v175 = vsel %vm39, %v131, 0.0
    %176 = vadd.xlane.f32.xlu0 %v175
    %v177 = vpop.xlane.xlu0 %176
    %v178 = vsel %vm39, %v133, 0.0
    %179 = vadd.xlane.f32.xlu0 %v178
    %v180 = vpop.xlane.xlu0 %179
    %v181 = vsel %vm39, %v135, 0.0
    %182 = vadd.xlane.f32.xlu0 %v181
    %v183 = vpop.xlane.xlu0 %182
    %v184 = vrcp.pop %v138
    %v185 = vrcp.pop %v141
    %v186 = vrcp.pop %v144
    %v187 = vrcp.pop %v147
    %v188 = vrcp.pop %v150
    %v189 = vrcp.pop %v153
    %v190 = vrcp.pop %v156
    %v191 = vrcp.pop %v159
    %v192 = vrcp.pop %v162
    %v193 = vrcp.pop %v165
    %v194 = vrcp.pop %v168
    %v195 = vrcp.pop %v171
    %v196 = vrcp.pop %v174
    %v197 = vrcp.pop %v177
    %v198 = vrcp.pop %v180
    %v199 = vrcp.pop %v183
    %v200 = vmul.f32 %v138, %v184
    %v201 = vmul.f32 %v141, %v185
    %v202 = vmul.f32 %v144, %v186
    %v203 = vmul.f32 %v147, %v187
    %v204 = vmul.f32 %v150, %v188
    %v205 = vmul.f32 %v153, %v189
    %v206 = vmul.f32 %v156, %v190
    %v207 = vmul.f32 %v159, %v191
    %v208 = vmul.f32 %v162, %v192
    %v209 = vmul.f32 %v165, %v193
    %v210 = vmul.f32 %v168, %v194
    %v211 = vmul.f32 %v171, %v195
    %v212 = vmul.f32 %v174, %v196
    %v213 = vmul.f32 %v177, %v197
    %v214 = vmul.f32 %v180, %v198
    %v215 = vmul.f32 %v183, %v199
    %v216 = vsub.f32 2.0, %v200
    %v217 = vsub.f32 2.0, %v201
    %v218 = vsub.f32 2.0, %v202
    %v219 = vsub.f32 2.0, %v203
    %v220 = vsub.f32 2.0, %v204
    %v221 = vsub.f32 2.0, %v205
    %v222 = vsub.f32 2.0, %v206
    %v223 = vsub.f32 2.0, %v207
    %v224 = vsub.f32 2.0, %v208
    %v225 = vsub.f32 2.0, %v209
    %v226 = vsub.f32 2.0, %v210
    %v227 = vsub.f32 2.0, %v211
    %v228 = vsub.f32 2.0, %v212
    %v229 = vsub.f32 2.0, %v213
    %v230 = vsub.f32 2.0, %v214
    %v231 = vsub.f32 2.0, %v215
    %v232 = vmul.f32 %v184, %v216
    %v233 = vmul.f32 %v185, %v217
    %v234 = vmul.f32 %v186, %v218
    %v235 = vmul.f32 %v187, %v219
    %v236 = vmul.f32 %v188, %v220
    %v237 = vmul.f32 %v189, %v221
    %v238 = vmul.f32 %v190, %v222
    %v239 = vmul.f32 %v191, %v223
    %v240 = vmul.f32 %v192, %v224
    %v241 = vmul.f32 %v193, %v225
    %v242 = vmul.f32 %v194, %v226
    %v243 = vmul.f32 %v195, %v227
    %v244 = vmul.f32 %v196, %v228
    %v245 = vmul.f32 %v197, %v229
    %v246 = vmul.f32 %v198, %v230
    %v247 = vmul.f32 %v199, %v231
    %v248 = vmul.f32 %v105, %v232
    %v249 = vmul.f32 %v107, %v233
    %v250 = vmul.f32 %v109, %v234
    %v251 = vmul.f32 %v111, %v235
    %v252 = vmul.f32 %v113, %v236
    %v253 = vmul.f32 %v115, %v237
    %v254 = vmul.f32 %v117, %v238
    %v255 = vmul.f32 %v119, %v239
    %v256 = vmul.f32 %v121, %v240
    %v257 = vmul.f32 %v123, %v241
    %v258 = vmul.f32 %v125, %v242
    %v259 = vmul.f32 %v127, %v243
    %v260 = vmul.f32 %v129, %v244
    %v261 = vmul.f32 %v131, %v245
    %v262 = vmul.f32 %v133, %v246
    %v263 = vmul.f32 %v135, %v247
    %264 = vst.msk [vmem:[#allocation5] sm:$0xff] %vm39, %v248
    %265 = vst.msk [vmem:[#allocation5 + $0x8] sm:$0xff] %vm39, %v249
    %266 = vst.msk [vmem:[#allocation5 + $0x10] sm:$0xff] %vm39, %v250
    %267 = vst.msk [vmem:[#allocation5 + $0x18] sm:$0xff] %vm39, %v251
    %268 = vst.msk [vmem:[#allocation5 + $0x20] sm:$0xff] %vm39, %v252
    %269 = vst.msk [vmem:[#allocation5 + $0x28] sm:$0xff] %vm39, %v253
    %270 = vst.msk [vmem:[#allocation5 + $0x30] sm:$0xff] %vm39, %v254
    %271 = vst.msk [vmem:[#allocation5 + $0x38] sm:$0xff] %vm39, %v255
    %272 = vst.msk [vmem:[#allocation5 + $0x40] sm:$0xff] %vm39, %v256
    %273 = vst.msk [vmem:[#allocation5 + $0x48] sm:$0xff] %vm39, %v257
    %274 = vst.msk [vmem:[#allocation5 + $0x50] sm:$0xff] %vm39, %v258
    %275 = vst.msk [vmem:[#allocation5 + $0x58] sm:$0xff] %vm39, %v259
    %276 = vst.msk [vmem:[#allocation5 + $0x60] sm:$0xff] %vm39, %v260
    %277 = vst.msk [vmem:[#allocation5 + $0x68] sm:$0xff] %vm39, %v261
    %278 = vst.msk [vmem:[#allocation5 + $0x70] sm:$0xff] %vm39, %v262
    %279 = vst.msk [vmem:[#allocation5 + $0x78] sm:$0xff] %vm39, %v263
    // Predicated region
    $region10: #{softmax_reversible_forward.1} parent=1 // pred_check
      _
    $region11: #{softmax_reversible_forward.1} parent=1 // pred_check_branch
      %281 = sbr.rel (0) target = $region13
    $region12: #{softmax_reversible_forward.1} parent=1 // pred_region
      %s283 = ssub.s32 2048, 2048
      %284 = vsyncadd [#allocation4], %s283
      %s285 = sshll.u32 [#allocation5], 4
      %s286 = int_to_ptr.vmem [resolvable:$true] %s285
      %291 = dma.vmem_to_hbm [thread:$0]  %s286, 2048, %s1, [#allocation4], 128, 128, 8
    $region13: #{softmax_reversible_forward.1} parent=1 // pred_fallthru
      _
    // Predicated region
    $region14: #{softmax_reversible_forward.1} parent=1 // pred_check
      _
    $region15: #{softmax_reversible_forward.1} parent=1 // pred_check_branch
      %293 = sbr.rel (0) target = $region17
    $region16: #{softmax_reversible_forward.1} parent=1 // pred_region
      %294 = dma.done [#allocation4], 2048
    $region17: #{softmax_reversible_forward.1} parent=1 // pred_fallthru
      _
    %295 = vsyncpa [#allocation3], 1
    %296 = vsyncpa [#allocation4], 1

</llo_original>
